<compile_context>
chip_gen: v7x
topology: tpu7x:2x2x1
jax: 0.10.0
libtpu: 0.0.40
codegen_flags: <defaults>
</compile_context>

<pallas_src>
import functools

import jax
import jax.numpy as jnp
from jax.experimental import pallas as pl
from jax.experimental.pallas import tpu as pltpu


def _sq_kernel(level, inv_level, z_ref, w_in_ref, b_in_ref, w_out_ref, b_out_ref, o_ref):
    # z_ref:     (DIM, T_TILE)   one (batch, T-tile) block, channel-major (native layout)
    # w_in_ref:  (CB, DIM)       torch Linear weight layout (out_features, in_features)
    # b_in_ref:  (CB, 1)
    # w_out_ref: (DIM, CB)
    # b_out_ref: (DIM, 1)
    # o_ref:     (DIM, T_TILE)   written in the caller's original dtype
    z = z_ref[...].astype(jnp.float32)          # in-kernel cast: HBM traffic stays narrow

    # project_in, contracting over DIM:  (CB, DIM) @ (DIM, Tt) -> (CB, Tt)
    y = jnp.dot(w_in_ref[...], z, preferred_element_type=jnp.float32) + b_in_ref[...]

    # quantize: round_ste(tanh(y) * level) / level   (forward of round_ste == round)
    q = jnp.round(jnp.tanh(y) * level) * inv_level

    # project_out, contracting over CB:  (DIM, CB) @ (CB, Tt) -> (DIM, Tt)
    out = jnp.dot(w_out_ref[...], q, preferred_element_type=jnp.float32) + b_out_ref[...]

    o_ref[...] = out.astype(o_ref.dtype)


def _gen_params():
    """Per-TPU-generation (f32 block byte target, vmem_limit_bytes)."""
    kind = ""
    try:
        kind = jax.devices()[0].device_kind.lower()
    except Exception:
        pass
    if "v7" in kind:                    # ~3.2 TB/s HBM, but only 64 MiB physical VMEM
        return 4 << 20, 48 * 1024 * 1024
    if "v6" in kind:                    # ~1.4 TB/s, 128 MiB VMEM
        return 2 << 20, 64 * 1024 * 1024
    if "v5" in kind:                    # ~0.8 TB/s, 128 MiB VMEM
        return 1 << 20, 64 * 1024 * 1024
    return 2 << 20, 64 * 1024 * 1024


def _choose_t_tile(T, DIM, B, target_bytes):
    """Pick a T tile: a multiple of 128 targeting ~target_bytes of f32 per (DIM, T_TILE) block."""
    if T <= 128:
        return T                                            # full (legal) block along T
    t = max(128, (target_bytes // (4 * max(DIM, 1)) // 128) * 128)
    t = min(t, ((T + 127) // 128) * 128)                    # never bigger than round_up(T, 128)
    # Shrink (staying a multiple of 128) until there are enough grid steps to shard across
    # v7x's two TensorCores and amortize pipeline fill/drain.
    MIN_STEPS = 8
    while t > 128 and B * ((T + t - 1) // t) < MIN_STEPS:
        t = max(128, ((t // 2) // 128) * 128)
    if t >= T:
        return T                                            # single full block along T
    return t


def scalar_quantizer_forward(z, w_in, b_in, w_out, b_out, level, t_tile=None):
    """z: (B, DIM, T) -> (B, DIM, T), matching ScalarQuantizer.forward (fsq=False).

    w_in:  (CB, DIM)   torch nn.Linear(dim, codebook_dim).weight layout
    b_in:  (CB,)
    w_out: (DIM, CB)   torch nn.Linear(codebook_dim, dim).weight layout
    b_out: (DIM,)
    """
    B, DIM, T = z.shape
    CB = w_in.shape[0]
    assert w_in.shape == (CB, DIM)
    assert b_in.shape == (CB,)
    assert w_out.shape == (DIM, CB)
    assert b_out.shape == (DIM,)

    # Module semantics: math in f32 (autocast disabled + .float()), result cast back to the
    # input dtype.  Both casts happen *inside* the kernel, so z / out move through HBM in
    # their native dtype (no extra full-tensor copy passes around the pallas_call).
    out_dtype = z.dtype

    w_in_f = w_in.astype(jnp.float32)
    w_out_f = w_out.astype(jnp.float32)
    b_in2 = b_in.reshape(CB, 1).astype(jnp.float32)
    b_out2 = b_out.reshape(DIM, 1).astype(jnp.float32)

    target_bytes, vmem_limit = _gen_params()
    T_TILE = int(t_tile) if t_tile is not None else _choose_t_tile(T, DIM, B, target_bytes)
    assert T_TILE == T or T_TILE % 128 == 0
    n_t = pl.cdiv(T, T_TILE)

    # NOTE: `level` is baked in as a Python float -> a different level triggers a retrace.
    kernel = functools.partial(_sq_kernel, float(level), 1.0 / float(level))

    return pl.pallas_call(
        kernel,
        out_shape=jax.ShapeDtypeStruct((B, DIM, T), out_dtype),
        grid_spec=pltpu.PrefetchScalarGridSpec(
            num_scalar_prefetch=0,
            grid=(B, n_t),
            in_specs=[
                # z: one batch row, one T tile, full channel dim -> kernel sees (DIM, T_TILE).
                # (If a profile shows exposed DMA on v7x, sweep pipeline_mode=pl.Buffered(3).)
                pl.BlockSpec((None, DIM, T_TILE), lambda b, t: (b, 0, t)),
                # weights / biases: full blocks, constant index maps (stay resident in VMEM)
                pl.BlockSpec((CB, DIM), lambda b, t: (0, 0)),
                pl.BlockSpec((CB, 1), lambda b, t: (0, 0)),
                pl.BlockSpec((DIM, CB), lambda b, t: (0, 0)),
                pl.BlockSpec((DIM, 1), lambda b, t: (0, 0)),
            ],
            out_specs=pl.BlockSpec((None, DIM, T_TILE), lambda b, t: (b, 0, t)),
        ),
        compiler_params=pltpu.CompilerParams(
            dimension_semantics=("parallel", "parallel"),
            vmem_limit_bytes=vmem_limit,
        ),
    )(z, w_in_f, b_in2, w_out_f, b_out2)


def _reference_forward(z, w_in, b_in, w_out, b_out, level):
    """Pure-JAX reference following the torch module literally ('b c t -> b t c', Linear, ...).

    Also returns a per-(b, t) mask of columns whose pre-round values are safely away from a
    rounding boundary; columns near a boundary can legitimately round differently between
    the TPU kernel and this reference due to ~1-ulp tanh/matmul differences.
    """
    z_btc = jnp.transpose(z.astype(jnp.float32), (0, 2, 1))
    y = jnp.matmul(z_btc, w_in.T.astype(jnp.float32), precision="highest") + b_in
    v = jnp.tanh(y) * level
    q = jnp.round(v) / level
    out = jnp.matmul(q, w_out.T.astype(jnp.float32), precision="highest") + b_out
    out = jnp.transpose(out, (0, 2, 1)).astype(z.dtype)
    safe_cols = jnp.all(jnp.abs(v - jnp.floor(v) - 0.5) > 1e-3, axis=-1)   # (B, T)
    return out, safe_cols


def _check(out, ref, safe_cols, atol=2e-4):
    err_ok = jnp.abs(out.astype(jnp.float32) - ref.astype(jnp.float32)) <= atol
    all_ok = jnp.all(err_ok | ~safe_cols[:, None, :])
    assert bool(all_ok), "kernel/reference mismatch outside rounding-boundary columns"
    assert float(jnp.mean(safe_cols.astype(jnp.float32))) > 0.9, "too many boundary columns"


if __name__ == "__main__":
    key = jax.random.PRNGKey(0)
    k0, k1, k2, k3, k4, k5 = jax.random.split(key, 6)

    LEVEL = 5
    B, DIM, CB = 2, 32, 16

    # Deterministic parameter init (nn.Linear-style uniform bounds, torch weight layout).
    bound_in = 1.0 / (DIM ** 0.5)
    bound_out = 1.0 / (CB ** 0.5)
    w_in = jax.random.uniform(k1, (CB, DIM), jnp.float32, -bound_in, bound_in)
    b_in = jax.random.uniform(k2, (CB,), jnp.float32, -bound_in, bound_in)
    w_out = jax.random.uniform(k3, (DIM, CB), jnp.float32, -bound_out, bound_out)
    b_out = jax.random.uniform(k4, (DIM,), jnp.float32, -bound_out, bound_out)

    # 1) small case: T <= 128 -> single full block along T.
    T1 = 16
    z1 = jax.random.normal(k0, (B, DIM, T1), jnp.float32)
    out1 = jax.block_until_ready(scalar_quantizer_forward(z1, w_in, b_in, w_out, b_out, LEVEL))
    ref1, safe1 = _reference_forward(z1, w_in, b_in, w_out, b_out, LEVEL)
    assert out1.shape == (B, DIM, T1) and out1.dtype == z1.dtype
    _check(out1, ref1, safe1)

    # 2) ragged-T case: forces a 128-lane tile with a partial last block
    #    (exercises the no-pad / masked-partial-store path).
    T2 = 200
    z2 = jax.random.normal(k5, (B, DIM, T2), jnp.float32)
    out2 = jax.block_until_ready(
        scalar_quantizer_forward(z2, w_in, b_in, w_out, b_out, LEVEL, t_tile=128))
    ref2, safe2 = _reference_forward(z2, w_in, b_in, w_out, b_out, LEVEL)
    assert out2.shape == (B, DIM, T2) and out2.dtype == z2.dtype
    _check(out2, ref2, safe2)

    print("KERNEL_OK")
</pallas_src>

<mosaic_0001>
module attributes {stable_mosaic.version = 11 : i64} {
  func.func @_sq_kernel(%arg0: i32, %arg1: i32, %arg2: memref<1x32x16xf32, #tpu.memory_space<vmem>>, %arg3: memref<16x32xf32, #tpu.memory_space<vmem>>, %arg4: memref<16x1xf32, #tpu.memory_space<vmem>>, %arg5: memref<32x16xf32, #tpu.memory_space<vmem>>, %arg6: memref<32x1xf32, #tpu.memory_space<vmem>>, %arg7: memref<1x32x16xf32, #tpu.memory_space<vmem>>) attributes {dimension_semantics = [#tpu.dimension_semantics<parallel>, #tpu.dimension_semantics<parallel>], iteration_bounds = array<i64: 2, 1>, scalar_prefetch = 0 : i64, scratch_operands = 0 : i64, tpu.core_type = #tpu.core_type<tc>, window_params = [{transform_indices = @transform_0, window_bounds = array<i64: 1, 32, 16>}, {pipeline_mode = #tpu.pipeline_mode<synchronous>, transform_indices = @transform_1, window_bounds = array<i64: 16, 32>}, {pipeline_mode = #tpu.pipeline_mode<synchronous>, transform_indices = @transform_2, window_bounds = array<i64: 16, 1>}, {pipeline_mode = #tpu.pipeline_mode<synchronous>, transform_indices = @transform_3, window_bounds = array<i64: 32, 16>}, {pipeline_mode = #tpu.pipeline_mode<synchronous>, transform_indices = @transform_4, window_bounds = array<i64: 32, 1>}, {transform_indices = @transform_5, window_bounds = array<i64: 1, 32, 16>}]} {
    %c0 = arith.constant 0 : index
    %c0_0 = arith.constant 0 : index
    %c0_1 = arith.constant 0 : index
    %0 = vector.load %arg2[%c0, %c0_0, %c0_1] : memref<1x32x16xf32, #tpu.memory_space<vmem>>, vector<1x32x16xf32>
    %1 = vector.shape_cast %0 : vector<1x32x16xf32> to vector<32x16xf32>
    %c0_2 = arith.constant 0 : index
    %c0_3 = arith.constant 0 : index
    %2 = vector.load %arg3[%c0_2, %c0_3] : memref<16x32xf32, #tpu.memory_space<vmem>>, vector<16x32xf32>
    %cst = arith.constant dense<0.000000e+00> : vector<16x16xf32>
    %3 = tpu.matmul %2, %1, %cst {dimension_numbers = #tpu.dot_dimension_numbers<[1], [0], [0], [1], [0, 0, 1, 1], [], []>} : vector<16x32xf32>, vector<32x16xf32>, vector<16x16xf32> -> vector<16x16xf32>
    %c0_4 = arith.constant 0 : index
    %c0_5 = arith.constant 0 : index
    %4 = vector.load %arg4[%c0_4, %c0_5] : memref<16x1xf32, #tpu.memory_space<vmem>>, vector<16x1xf32>
    %5 = vector.broadcast %4 : vector<16x1xf32> to vector<16x16xf32>
    %6 = arith.addf %3, %5 : vector<16x16xf32>
    %7 = math.tanh %6 : vector<16x16xf32>
    %cst_6 = arith.constant 5.000000e+00 : f32
    %8 = vector.broadcast %cst_6 : f32 to vector<16x16xf32>
    %9 = arith.mulf %7, %8 : vector<16x16xf32>
    %10 = math.roundeven %9 : vector<16x16xf32>
    %cst_7 = arith.constant 2.000000e-01 : f32
    %11 = vector.broadcast %cst_7 : f32 to vector<16x16xf32>
    %12 = arith.mulf %10, %11 : vector<16x16xf32>
    %c0_8 = arith.constant 0 : index
    %c0_9 = arith.constant 0 : index
    %13 = vector.load %arg5[%c0_8, %c0_9] : memref<32x16xf32, #tpu.memory_space<vmem>>, vector<32x16xf32>
    %cst_10 = arith.constant dense<0.000000e+00> : vector<32x16xf32>
    %14 = tpu.matmul %13, %12, %cst_10 {dimension_numbers = #tpu.dot_dimension_numbers<[1], [0], [0], [1], [0, 0, 1, 1], [], []>} : vector<32x16xf32>, vector<16x16xf32>, vector<32x16xf32> -> vector<32x16xf32>
    %c0_11 = arith.constant 0 : index
    %c0_12 = arith.constant 0 : index
    %15 = vector.load %arg6[%c0_11, %c0_12] : memref<32x1xf32, #tpu.memory_space<vmem>>, vector<32x1xf32>
    %16 = vector.broadcast %15 : vector<32x1xf32> to vector<32x16xf32>
    %17 = arith.addf %14, %16 : vector<32x16xf32>
    %c0_13 = arith.constant 0 : index
    %c0_14 = arith.constant 0 : index
    %c0_15 = arith.constant 0 : index
    %18 = vector.load %arg7[%c0_13, %c0_14, %c0_15] : memref<1x32x16xf32, #tpu.memory_space<vmem>>, vector<1x32x16xf32>
    %19 = vector.shape_cast %18 : vector<1x32x16xf32> to vector<32x16xf32>
    %20 = vector.shape_cast %17 : vector<32x16xf32> to vector<1x32x16xf32>
    tpu.vector_store %arg7[%c0_13, %c0_14, %c0_15], %20 {strides = array<i32>} : memref<1x32x16xf32, #tpu.memory_space<vmem>>, vector<1x32x16xf32>,
    return
  }
  func.func @transform_0(%arg0: i32, %arg1: i32) -> (i32, i32, i32) {
    %c0_i32 = arith.constant 0 : i32
    %c0_i32_0 = arith.constant 0 : i32
    return %arg0, %c0_i32, %arg1 : i32, i32, i32
  }
  func.func @transform_1(%arg0: i32, %arg1: i32) -> (i32, i32) {
    %c0_i32 = arith.constant 0 : i32
    %c0_i32_0 = arith.constant 0 : i32
    %c0_i32_1 = arith.constant 0 : i32
    return %c0_i32, %c0_i32_0 : i32, i32
  }
  func.func @transform_2(%arg0: i32, %arg1: i32) -> (i32, i32) {
    %c0_i32 = arith.constant 0 : i32
    %c0_i32_0 = arith.constant 0 : i32
    %c0_i32_1 = arith.constant 0 : i32
    return %c0_i32, %c0_i32_0 : i32, i32
  }
  func.func @transform_3(%arg0: i32, %arg1: i32) -> (i32, i32) {
    %c0_i32 = arith.constant 0 : i32
    %c0_i32_0 = arith.constant 0 : i32
    %c0_i32_1 = arith.constant 0 : i32
    return %c0_i32, %c0_i32_0 : i32, i32
  }
  func.func @transform_4(%arg0: i32, %arg1: i32) -> (i32, i32) {
    %c0_i32 = arith.constant 0 : i32
    %c0_i32_0 = arith.constant 0 : i32
    %c0_i32_1 = arith.constant 0 : i32
    return %c0_i32, %c0_i32_0 : i32, i32
  }
  func.func @transform_5(%arg0: i32, %arg1: i32) -> (i32, i32, i32) {
    %c0_i32 = arith.constant 0 : i32
    %c0_i32_0 = arith.constant 0 : i32
    return %arg0, %c0_i32, %arg1 : i32, i32, i32
  }
}

</mosaic_0001>

<llo_original>
// kernel: tpu_custom_call.1
$region0: #{tpu_custom_call.1}
  #allocation0 [shape = 'u32[]', space=smem, size = 0x4, offset = 0x4, fixed_abs, tag = 'smem constant byte address 0x4 - core index']
  #allocation1 [shape = 'u32[144,128]{1,0:T(1,128)}', space=vmem, size = 0x12000, scoped, tag = 'internal scratch']
  %s0 = inlined_call_operand.hbm [shape: f32[2,32,16], index: 0, kind: input, shape index: {}]
  %s1 = inlined_call_operand.hbm [shape: f32[16,32], index: 1, kind: input, shape index: {}]
  %s2 = inlined_call_operand.hbm [shape: f32[16,1], index: 2, kind: input, shape index: {}]
  %s3 = inlined_call_operand.hbm [shape: f32[32,16], index: 3, kind: input, shape index: {}]
  %s4 = inlined_call_operand.hbm [shape: f32[32,1], index: 4, kind: input, shape index: {}]
  %s5 = inlined_call_operand.hbm [shape: f32[2,32,16], index: 5, kind: output, shape index: {}]
  %s6 = sld [smem:[#allocation0]]
  $region73: #{tpu_custom_call.1} parent=0
    _
  %s8 = ssub.s32 1, %s6
  %s9 = scalar_select 0, %s8, %s6
  $region1: #{tpu_custom_call.1} parent=0
    #allocation2 [shape = 'u8[32768]{0}', space=vmem, size = 0x8000, scoped, tag = 'input window, operand 0']
    #allocation3 [shape = 's32[2]{0}', space=sflag, size = 0x8, scoped, tag = 'scoped memory for tpu_custom_call.1']
    #allocation4 [shape = 's32[2]{0}', space=sflag, size = 0x8, scoped, tag = 'scoped memory for tpu_custom_call.1']
    #allocation5 [shape = 'u8[8192]{0}', space=vmem, size = 0x2000, scoped, tag = 'input window, operand 1, single buffered']
    #allocation6 [shape = 's32[1]{0}', space=sflag, size = 0x4, scoped, tag = 'scoped memory for tpu_custom_call.1']
    #allocation7 [shape = 'u8[8192]{0}', space=vmem, size = 0x2000, scoped, tag = 'input window, operand 2, single buffered']
    #allocation8 [shape = 'u8[16384]{0}', space=vmem, size = 0x4000, scoped, tag = 'input window, operand 3, single buffered']
    #allocation9 [shape = 's32[1]{0}', space=sflag, size = 0x4, scoped, tag = 'scoped memory for tpu_custom_call.1']
    #allocation10 [shape = 'u8[16384]{0}', space=vmem, size = 0x4000, scoped, tag = 'input window, operand 4, single buffered']
    #allocation11 [shape = 'u8[32768]{0}', space=vmem, size = 0x8000, scoped, tag = 'output window, operand 0']
    %10 = vsyncpa [#allocation3], 0
    %s11 = scalar_lea.sflag [#allocation3], 1
    %12 = vsyncpa %s11, 0
    %13 = vsyncpa [#allocation6], 0
    %14 = vsyncpa [#allocation9], 0
    %15 = vsyncpa [#allocation4], 0
    %s16 = scalar_lea.sflag [#allocation4], 1
    %17 = vsyncpa %s16, 0
    loop: start=0, step=1, limit=4
    $region2: #{tpu_custom_call.1} parent=1 // loop_pre_header
      _
    $region3: #{tpu_custom_call.1} parent=1 // loop_header
      %s19 = sphi 0, %s23
      %p20 = scmp.ge.s32.totalorder %s19, 4
      %s26 = sphi 0, %s38
      %s27 = sphi 0, %s34
      %s28 = sphi 0, %s26
      %s29 = sphi 0, %s27
      %s30 = sphi 0, %s28
      %s31 = sphi 0, %s29
      %s43 = sphi 0, %s45
      %s46 = sphi 0, %s43
      %s47 = sphi 0, %s46
      %s63 = sphi 0, %s47
      %s67 = sphi 0, %s67
      %s69 = sphi 0, %s67
      %s70 = sphi 0, %s69
      %s84 = sphi 0, %s70
      %s88 = sphi 0, %s88
      %s90 = sphi 0, %s88
      %s91 = sphi 0, %s90
      %s105 = sphi 0, %s91
      %s109 = sphi 0, %s109
      %s111 = sphi 0, %s109
      %s112 = sphi 0, %s111
      %s126 = sphi 0, %s112
      %s130 = sphi 0, %s130
      %s132 = sphi 0, %s130
      %s133 = sphi 0, %s132
      %s147 = sphi 0, %s133
      %s155 = sphi 0, %s157
      %s158 = sphi 0, %s155
      %s159 = sphi 0, %s158
      %s175 = sphi 0, %s159
    $region4: #{tpu_custom_call.1} parent=1 // loop_header_branch
      %22 = sbr.rel (%p20) target = $region8
    $region5: #{tpu_custom_call.1} parent=1 // loop_body
      %s24 = ssub.s32 %s19, 1
      %s25 = ssub.s32 %s19, 2
      %s32 = sadd.s32 1, %s27
      %p33 = scmp.ge.s32.totalorder %s32, 1
      %s34 = scalar_select %p33, 0, %s32
      %s35 = sadd.s32 1, %s26
      %s36 = scalar_select %p33, %s35, %s26
      %p37 = scmp.ge.s32.totalorder %s36, 2
      %s38 = scalar_select %p37, 0, %s36
      %s39 = ssub.s32 %s26, %s38
      %s40 = ssub.s32 %s27, %s34
      %s41 = sor.u32 %s39, %s40
      %p42 = scmp.eq.s32.totalorder %s41, 0
      %s44 = sadd.s32 %s43, 1
      %s45 = scalar_select %p42, %s43, %s44
      %p48 = pneg %p42
      %p49 = scmp.eq.s32.totalorder %s19, 1
      %p50 = por %p48, %p49
      %p51 = scmp.ne.s32.totalorder %s43, %s46
      %p52 = scmp.eq.s32.totalorder %s19, 0
      %p53 = por %p51, %p52
      %p54 = scmp.ne.s32.totalorder %s43, %s46
      %p55 = scmp.eq.s32.totalorder %s24, 1
      %p56 = por %p54, %p55
      %p57 = scmp.ne.s32.totalorder %s46, %s47
      %p58 = scmp.eq.s32.totalorder %s24, 0
      %p59 = por %p57, %p58
      %p60 = scmp.ne.s32.totalorder %s46, %s47
      %p61 = scmp.eq.s32.totalorder %s25, 1
      %p62 = por %p60, %p61
      %p64 = scmp.ne.s32.totalorder %s47, %s63
      %p65 = scmp.eq.s32.totalorder %s25, 0
      %p66 = por %p64, %p65
      %s68 = sadd.s32 %s67, 1
      %p71 = scmp.eq.s32.totalorder %s19, 1
      %p72 = scmp.ne.s32.totalorder %s67, %s69
      %p73 = scmp.eq.s32.totalorder %s19, 0
      %p74 = por %p72, %p73
      %p75 = scmp.ne.s32.totalorder %s67, %s69
      %p76 = scmp.eq.s32.totalorder %s24, 1
      %p77 = por %p75, %p76
      %p78 = scmp.ne.s32.totalorder %s69, %s70
      %p79 = scmp.eq.s32.totalorder %s24, 0
      %p80 = por %p78, %p79
      %p81 = scmp.ne.s32.totalorder %s69, %s70
      %p82 = scmp.eq.s32.totalorder %s25, 1
      %p83 = por %p81, %p82
      %p85 = scmp.ne.s32.totalorder %s70, %s84
      %p86 = scmp.eq.s32.totalorder %s25, 0
      %p87 = por %p85, %p86
      %s89 = sadd.s32 %s88, 1
      %p92 = scmp.eq.s32.totalorder %s19, 1
      %p93 = scmp.ne.s32.totalorder %s88, %s90
      %p94 = scmp.eq.s32.totalorder %s19, 0
      %p95 = por %p93, %p94
      %p96 = scmp.ne.s32.totalorder %s88, %s90
      %p97 = scmp.eq.s32.totalorder %s24, 1
      %p98 = por %p96, %p97
      %p99 = scmp.ne.s32.totalorder %s90, %s91
      %p100 = scmp.eq.s32.totalorder %s24, 0
      %p101 = por %p99, %p100
      %p102 = scmp.ne.s32.totalorder %s90, %s91
      %p103 = scmp.eq.s32.totalorder %s25, 1
      %p104 = por %p102, %p103
      %p106 = scmp.ne.s32.totalorder %s91, %s105
      %p107 = scmp.eq.s32.totalorder %s25, 0
      %p108 = por %p106, %p107
      %s110 = sadd.s32 %s109, 1
      %p113 = scmp.eq.s32.totalorder %s19, 1
      %p114 = scmp.ne.s32.totalorder %s109, %s111
      %p115 = scmp.eq.s32.totalorder %s19, 0
      %p116 = por %p114, %p115
      %p117 = scmp.ne.s32.totalorder %s109, %s111
      %p118 = scmp.eq.s32.totalorder %s24, 1
      %p119 = por %p117, %p118
      %p120 = scmp.ne.s32.totalorder %s111, %s112
      %p121 = scmp.eq.s32.totalorder %s24, 0
      %p122 = por %p120, %p121
      %p123 = scmp.ne.s32.totalorder %s111, %s112
      %p124 = scmp.eq.s32.totalorder %s25, 1
      %p125 = por %p123, %p124
      %p127 = scmp.ne.s32.totalorder %s112, %s126
      %p128 = scmp.eq.s32.totalorder %s25, 0
      %p129 = por %p127, %p128
      %s131 = sadd.s32 %s130, 1
      %p134 = scmp.eq.s32.totalorder %s19, 1
      %p135 = scmp.ne.s32.totalorder %s130, %s132
      %p136 = scmp.eq.s32.totalorder %s19, 0
      %p137 = por %p135, %p136
      %p138 = scmp.ne.s32.totalorder %s130, %s132
      %p139 = scmp.eq.s32.totalorder %s24, 1
      %p140 = por %p138, %p139
      %p141 = scmp.ne.s32.totalorder %s132, %s133
      %p142 = scmp.eq.s32.totalorder %s24, 0
      %p143 = por %p141, %p142
      %p144 = scmp.ne.s32.totalorder %s132, %s133
      %p145 = scmp.eq.s32.totalorder %s25, 1
      %p146 = por %p144, %p145
      %p148 = scmp.ne.s32.totalorder %s133, %s147
      %p149 = scmp.eq.s32.totalorder %s25, 0
      %p150 = por %p148, %p149
      %s151 = ssub.s32 %s26, %s38
      %s152 = ssub.s32 %s27, %s34
      %s153 = sor.u32 %s151, %s152
      %p154 = scmp.eq.s32.totalorder %s153, 0
      %s156 = sadd.s32 %s155, 1
      %s157 = scalar_select %p154, %s155, %s156
      %p160 = pneg %p154
      %p161 = scmp.eq.s32.totalorder %s19, 1
      %p162 = por %p160, %p161
      %p163 = scmp.ne.s32.totalorder %s155, %s158
      %p164 = scmp.eq.s32.totalorder %s19, 0
      %p165 = por %p163, %p164
      %p166 = scmp.ne.s32.totalorder %s155, %s158
      %p167 = scmp.eq.s32.totalorder %s24, 1
      %p168 = por %p166, %p167
      %p169 = scmp.ne.s32.totalorder %s158, %s159
      %p170 = scmp.eq.s32.totalorder %s24, 0
      %p171 = por %p169, %p170
      %p172 = scmp.ne.s32.totalorder %s158, %s159
      %p173 = scmp.eq.s32.totalorder %s25, 1
      %p174 = por %p172, %p173
      %p176 = scmp.ne.s32.totalorder %s159, %s175
      %p177 = scmp.eq.s32.totalorder %s25, 0
      %p178 = por %p176, %p177
      %p179 = scmp.le.s32.totalorder 1, %s19
      %p180 = scmp.lt.s32.totalorder %s19, 3
      %p181 = pnand %p179, %p180
      %p182 = pneg %p181
      // Predicated region
      $region9: #{tpu_custom_call.1} parent=5 // pred_check
        _
      $region10: #{tpu_custom_call.1} parent=5 // pred_check_branch
        %184 = sbr.rel (%p181) target = $region12
      $region11: #{tpu_custom_call.1} parent=5 // pred_region
        %s185 = ssub.s32 %s19, 1
        // Predicated region
        $region13: #{tpu_custom_call.1} parent=11 // pred_check
          %p186 = pneg %p80
        $region14: #{tpu_custom_call.1} parent=11 // pred_check_branch
          %188 = sbr.rel (%p186) target = $region16
        $region15: #{tpu_custom_call.1} parent=11 // pred_region
          %s190 = ssub.s32 256, 256
          %191 = vsyncadd [#allocation6], %s190
          %s192 = sshll.u32 [#allocation5], 4
          %s193 = int_to_ptr.vmem [resolvable:$true] %s192
          %198 = dma.hbm_to_vmem [thread:$0]  %s1, 256, %s193, [#allocation6], 128, 128, 8
        $region16: #{tpu_custom_call.1} parent=11 // pred_fallthru
          _
        // Predicated region
        $region17: #{tpu_custom_call.1} parent=11 // pred_check
          %p199 = pneg %p101
        $region18: #{tpu_custom_call.1} parent=11 // pred_check_branch
          %201 = sbr.rel (%p199) target = $region20
        $region19: #{tpu_custom_call.1} parent=11 // pred_region
          %s203 = ssub.s32 256, 256
          %204 = vsyncadd [#allocation6], %s203
          %s205 = sshll.u32 [#allocation7], 4
          %s206 = int_to_ptr.vmem [resolvable:$true] %s205
          %211 = dma.hbm_to_vmem [thread:$0]  %s2, 256, %s206, [#allocation6], 128, 128, 8
        $region20: #{tpu_custom_call.1} parent=11 // pred_fallthru
          _
        // Predicated region
        $region21: #{tpu_custom_call.1} parent=11 // pred_check
          %p212 = pneg %p122
        $region22: #{tpu_custom_call.1} parent=11 // pred_check_branch
          %214 = sbr.rel (%p212) target = $region24
        $region23: #{tpu_custom_call.1} parent=11 // pred_region
          %s216 = ssub.s32 512, 512
          %217 = vsyncadd [#allocation9], %s216
          %s218 = sshll.u32 [#allocation8], 4
          %s219 = int_to_ptr.vmem [resolvable:$true] %s218
          %224 = dma.hbm_to_vmem [thread:$0]  %s3, 512, %s219, [#allocation9], 128, 128, 8
        $region24: #{tpu_custom_call.1} parent=11 // pred_fallthru
          _
        // Predicated region
        $region25: #{tpu_custom_call.1} parent=11 // pred_check
          %p225 = pneg %p143
        $region26: #{tpu_custom_call.1} parent=11 // pred_check_branch
          %227 = sbr.rel (%p225) target = $region28
        $region27: #{tpu_custom_call.1} parent=11 // pred_region
          %s229 = ssub.s32 512, 512
          %230 = vsyncadd [#allocation9], %s229
          %s231 = sshll.u32 [#allocation10], 4
          %s232 = int_to_ptr.vmem [resolvable:$true] %s231
          %237 = dma.hbm_to_vmem [thread:$0]  %s4, 512, %s232, [#allocation9], 128, 128, 8
        $region28: #{tpu_custom_call.1} parent=11 // pred_fallthru
          _
      $region12: #{tpu_custom_call.1} parent=5 // pred_fallthru
        _
      %p238 = scmp.lt.s32.totalorder %s19, 2
      // Predicated region
      $region29: #{tpu_custom_call.1} parent=5 // pred_check
        %p239 = pneg %p238
      $region30: #{tpu_custom_call.1} parent=5 // pred_check_branch
        %241 = sbr.rel (%p239) target = $region32
      $region31: #{tpu_custom_call.1} parent=5 // pred_region
        // Predicated region
        $region33: #{tpu_custom_call.1} parent=31 // pred_check
          %p242 = pneg %p53
        $region34: #{tpu_custom_call.1} parent=31 // pred_check_branch
          %244 = sbr.rel (%p242) target = $region36
        $region35: #{tpu_custom_call.1} parent=31 // pred_region
          %s245 = sand.u32 %s43, 1
          %s246 = scalar_lea.sflag [#allocation3], %s245
          %s247 = sand.u32 %s43, 1
          %s248 = smul.addr %s247, 32
          %s249 = scalar_lea.vmem [#allocation2], %s248
          %s251 = ssub.s32 512, 512
          %252 = vsyncadd %s246, %s251
          %s253 = smul.addr %s26, 4
          %s254 = sadd.s32 %s27, %s253
          %s255 = smul.addr %s254, 128
          %s256 = scalar_lea.hbm %s0, %s255
          %s257 = sshll.u32 %s249, 4
          %s258 = int_to_ptr.vmem [resolvable:$true] %s257
          %263 = dma.hbm_to_vmem [thread:$0]  %s256, 512, %s258, %s246, 128, 128, 8
        $region36: #{tpu_custom_call.1} parent=31 // pred_fallthru
          _
      $region32: #{tpu_custom_call.1} parent=5 // pred_fallthru
        _
      %p264 = scmp.le.s32.totalorder 1, %s19
      %p265 = scmp.lt.s32.totalorder %s19, 3
      %p266 = pnand %p264, %p265
      %p267 = pneg %p266
      // Predicated region
      $region37: #{tpu_custom_call.1} parent=5 // pred_check
        _
      $region38: #{tpu_custom_call.1} parent=5 // pred_check_branch
        %269 = sbr.rel (%p266) target = $region40
      $region39: #{tpu_custom_call.1} parent=5 // pred_region
        %s270 = ssub.s32 %s19, 1
        %s271 = sand.u32 %s46, 1
        %s272 = scalar_lea.sflag [#allocation3], %s271
        %s273 = sand.u32 %s46, 1
        %s274 = smul.addr %s273, 32
        %s275 = scalar_lea.vmem [#allocation2], %s274
        // Predicated region
        $region41: #{tpu_custom_call.1} parent=39 // pred_check
          %p276 = pneg %p59
        $region42: #{tpu_custom_call.1} parent=39 // pred_check_branch
          %278 = sbr.rel (%p276) target = $region44
        $region43: #{tpu_custom_call.1} parent=39 // pred_region
          %279 = dma.done %s272, 512
        $region44: #{tpu_custom_call.1} parent=39 // pred_fallthru
          _
        // Predicated region
        $region45: #{tpu_custom_call.1} parent=39 // pred_check
          %p280 = pneg %p80
        $region46: #{tpu_custom_call.1} parent=39 // pred_check_branch
          %282 = sbr.rel (%p280) target = $region48
        $region47: #{tpu_custom_call.1} parent=39 // pred_region
          %283 = dma.done [#allocation6], 256
        $region48: #{tpu_custom_call.1} parent=39 // pred_fallthru
          _
        // Predicated region
        $region49: #{tpu_custom_call.1} parent=39 // pred_check
          %p284 = pneg %p101
        $region50: #{tpu_custom_call.1} parent=39 // pred_check_branch
          %286 = sbr.rel (%p284) target = $region52
        $region51: #{tpu_custom_call.1} parent=39 // pred_region
          %287 = dma.done [#allocation6], 256
        $region52: #{tpu_custom_call.1} parent=39 // pred_fallthru
          _
        // Predicated region
        $region53: #{tpu_custom_call.1} parent=39 // pred_check
          %p288 = pneg %p122
        $region54: #{tpu_custom_call.1} parent=39 // pred_check_branch
          %290 = sbr.rel (%p288) target = $region56
        $region55: #{tpu_custom_call.1} parent=39 // pred_region
          %291 = dma.done [#allocation9], 512
        $region56: #{tpu_custom_call.1} parent=39 // pred_fallthru
          _
        // Predicated region
        $region57: #{tpu_custom_call.1} parent=39 // pred_check
          %p292 = pneg %p143
        $region58: #{tpu_custom_call.1} parent=39 // pred_check_branch
          %294 = sbr.rel (%p292) target = $region60
        $region59: #{tpu_custom_call.1} parent=39 // pred_region
          %295 = dma.done [#allocation9], 512
        $region60: #{tpu_custom_call.1} parent=39 // pred_fallthru
          _
        %s296 = sand.u32 %s46, 1
        %s297 = scalar_lea.sflag [#allocation3], %s296
        %s298 = sand.u32 %s46, 1
        %s299 = smul.addr %s298, 32
        %s300 = scalar_lea.vmem [#allocation2], %s299
        %p301 = pneg %p59
        %p302 = pneg %p56
        %p303 = pneg %p80
        %p304 = pneg %p77
        %p305 = pneg %p101
        %p306 = pneg %p98
        %p307 = pneg %p122
        %p308 = pneg %p119
        %p309 = pneg %p143
        %p310 = pneg %p140
        %p311 = pneg %p171
        %p312 = pneg %p168
        %s313 = sand.u32 %s158, 1
        %s314 = scalar_lea.sflag [#allocation4], %s313
        %s315 = sand.u32 %s158, 1
        %s316 = smul.addr %s315, 32
        %s317 = scalar_lea.vmem [#allocation11], %s316
        %v318 = vld [vmem:[%s275] sm:$0xff]
        %v319 = vld [vmem:[%s275 + $0x8] sm:$0xff]
        %v320 = vld [vmem:[%s275 + $0x10] sm:$0xff]
        %v321 = vld [vmem:[%s275 + $0x18] sm:$0xff]
        %v322 = vld [vmem:[#allocation5] sm:$0xff]
        %v323 = vld [vmem:[#allocation5 + $0x8] sm:$0xff]
        %v324 = vld [vmem:[#allocation7] sm:$0xff]
        %v325 = vld [vmem:[#allocation7 + $0x8] sm:$0xff]
        %327 = vset.pattern.permute.xlu0 0
        %328 = vperm.xlu0 %327, %v324
        %v329 = vpop.permute.xlu0 %328
        %332 = vset.pattern.permute.xlu0 0
        %333 = vperm.xlu0 %332, %v325
        %v334 = vpop.permute.xlu0 %333
        %vm336 = vcmask 261120
        %v338 = vsel %vm336, %v322, 0
        %v341 = vsel %vm336, %v323, 0
        %343 = vmatprep.subr.mxu0 0.0
        %344 = vmatpush1.msra.mxu0 %v318
        %345 = vmatprep.subr.mxu0 0.0
        %346 = vmatpush1.msra.mxu0 %v319
        %347 = vmatprep.subr.mxu0 0.0
        %348 = vmatpush1.msra.mxu0 %v320
        %349 = vmatprep.subr.mxu0 0.0
        %350 = vmatpush1.msra.mxu0 %v321
        %351 = vmatprep.subr.mxu0 0.0
        %352 = vmatpush1.msra.mxu0 0.0
        %353 = vmatprep.subr.mxu0 0.0
        %354 = vmatpush1.msra.mxu0 0.0
        %355 = vmatprep.subr.mxu0 0.0
        %356 = vmatpush1.msra.mxu0 0.0
        %357 = vmatprep.subr.mxu0 0.0
        %358 = vmatpush1.msra.mxu0 0.0
        %359 = vmatprep.subr.mxu0 0.0
        %360 = vmatpush1.msra.mxu0 0.0
        %361 = vmatprep.subr.mxu0 0.0
        %362 = vmatpush1.msra.mxu0 0.0
        %363 = vmatprep.subr.mxu0 0.0
        %364 = vmatpush1.msra.mxu0 0.0
        %365 = vmatprep.subr.mxu0 0.0
        %366 = vmatpush1.msra.mxu0 0.0
        %367 = vmatprep.subr.mxu0 0.0
        %368 = vmatpush1.msra.mxu0 0.0
        %369 = vmatprep.subr.mxu0 0.0
        %370 = vmatpush1.msra.mxu0 0.0
        %371 = vmatprep.subr.mxu0 0.0
        %372 = vmatpush1.msra.mxu0 0.0
        %373 = vmatprep.subr.mxu0 0.0
        %374 = vmatpush1.msra.mxu0 0.0
        %375 = vmatprep.subr.mxu0 0.0
        %376 = vmatpush1.msra.mxu0 0.0
        %377 = vmatprep.subr.mxu0 0.0
        %378 = vmatpush1.msra.mxu0 0.0
        %379 = vmatprep.subr.mxu0 0.0
        %380 = vmatpush1.msra.mxu0 0.0
        %381 = vmatprep.subr.mxu0 0.0
        %382 = vmatpush1.msra.mxu0 0.0
        %383 = vmatprep.subr.mxu0 0.0
        %384 = vmatpush1.msra.mxu0 0.0
        %385 = vmatprep.subr.mxu0 0.0
        %386 = vmatpush1.msra.mxu0 0.0
        %387 = vmatprep.subr.mxu0 0.0
        %388 = vmatpush1.msra.mxu0 0.0
        %389 = vmatprep.subr.mxu0 0.0
        %390 = vmatpush1.msra.mxu0 0.0
        %391 = vmatprep.subr.mxu0 0.0
        %392 = vmatpush1.msra.mxu0 0.0
        %393 = vmatprep.subr.mxu0 0.0
        %394 = vmatpush1.msra.mxu0 0.0
        %395 = vmatprep.subr.mxu0 0.0
        %396 = vmatpush1.msra.mxu0 0.0
        %397 = vmatprep.subr.mxu0 0.0
        %398 = vmatpush1.msra.mxu0 0.0
        %399 = vmatprep.subr.mxu0 0.0
        %400 = vmatpush1.msra.mxu0 0.0
        %401 = vmatprep.subr.mxu0 0.0
        %402 = vmatpush1.msra.mxu0 0.0
        %403 = vmatprep.subr.mxu0 0.0
        %404 = vmatpush1.msra.mxu0 0.0
        %405 = vmatprep.subr.mxu0 0.0
        %406 = vmatpush1.msra.mxu0 0.0
        %407 = vmatprep.mubr.f32.mxu0 0.0
        %408 = vmatmul.mubr.f32.gmra.mrb[0].mxu0 %v338
        %v409 = vpop.f32.mrb[0].mxu0
        %v410 = vadd.f32 %v329, %v409
        %v411 = vpop.f32.mrb[0].mxu0
        %412 = vmatprep.mubr.f32.mxu0 0.0
        %413 = vmatmul.mubr.f32.gmra.mrb[0].mxu0 %v341
        %v414 = vpop.f32.mrb[0].mxu0
        %v415 = vadd.f32 %v334, %v414
        %v416 = vpop.f32.mrb[0].mxu0
        %417 = vdwg.mxu0
        %v418 = vtanh.pop %v410
        %v419 = vtanh.pop %v415
        %v420 = vmul.f32 %v418, 5.0
        %v421 = vmul.f32 %v419, 5.0
        %v422 = vround.ne.pseudo %v420
        %v423 = vround.ne.pseudo %v421
        %v424 = vmul.f32 %v422, 0.2
        %v425 = vmul.f32 %v423, 0.2
        %v426 = vld [vmem:[#allocation8] sm:$0xff]
        %v427 = vld [vmem:[#allocation8 + $0x8] sm:$0xff]
        %v428 = vld [vmem:[#allocation8 + $0x10] sm:$0xff]
        %v429 = vld [vmem:[#allocation8 + $0x18] sm:$0xff]
        %v430 = vld [vmem:[#allocation10] sm:$0xff]
        %v431 = vld [vmem:[#allocation10 + $0x8] sm:$0xff]
        %v432 = vld [vmem:[#allocation10 + $0x10] sm:$0xff]
        %v433 = vld [vmem:[#allocation10 + $0x18] sm:$0xff]
        %435 = vset.pattern.permute.xlu0 0
        %436 = vperm.xlu0 %435, %v430
        %v437 = vpop.permute.xlu0 %436
        %440 = vset.pattern.permute.xlu0 0
        %441 = vperm.xlu0 %440, %v431
        %v442 = vpop.permute.xlu0 %441
        %445 = vset.pattern.permute.xlu0 0
        %446 = vperm.xlu0 %445, %v432
        %v447 = vpop.permute.xlu0 %446
        %450 = vset.pattern.permute.xlu0 0
        %451 = vperm.xlu0 %450, %v433
        %v452 = vpop.permute.xlu0 %451
        %vm454 = vcmask 130048
        %v456 = vsel %vm454, %v426, 0
        %v459 = vsel %vm454, %v427, 0
        %v462 = vsel %vm454, %v428, 0
        %v465 = vsel %vm454, %v429, 0
        %467 = vmatprep.subr.mxu0 0.0
        %468 = vmatpush1.msra.mxu0 %v424
        %469 = vmatprep.subr.mxu0 0.0
        %470 = vmatpush1.msra.mxu0 %v425
        %471 = vmatprep.subr.mxu0 0.0
        %472 = vmatpush1.msra.mxu0 0.0
        %473 = vmatprep.subr.mxu0 0.0
        %474 = vmatpush1.msra.mxu0 0.0
        %475 = vmatprep.subr.mxu0 0.0
        %476 = vmatpush1.msra.mxu0 0.0
        %477 = vmatprep.subr.mxu0 0.0
        %478 = vmatpush1.msra.mxu0 0.0
        %479 = vmatprep.subr.mxu0 0.0
        %480 = vmatpush1.msra.mxu0 0.0
        %481 = vmatprep.subr.mxu0 0.0
        %482 = vmatpush1.msra.mxu0 0.0
        %483 = vmatprep.subr.mxu0 0.0
        %484 = vmatpush1.msra.mxu0 0.0
        %485 = vmatprep.subr.mxu0 0.0
        %486 = vmatpush1.msra.mxu0 0.0
        %487 = vmatprep.subr.mxu0 0.0
        %488 = vmatpush1.msra.mxu0 0.0
        %489 = vmatprep.subr.mxu0 0.0
        %490 = vmatpush1.msra.mxu0 0.0
        %491 = vmatprep.subr.mxu0 0.0
        %492 = vmatpush1.msra.mxu0 0.0
        %493 = vmatprep.subr.mxu0 0.0
        %494 = vmatpush1.msra.mxu0 0.0
        %495 = vmatprep.subr.mxu0 0.0
        %496 = vmatpush1.msra.mxu0 0.0
        %497 = vmatprep.subr.mxu0 0.0
        %498 = vmatpush1.msra.mxu0 0.0
        %499 = vmatprep.subr.mxu0 0.0
        %500 = vmatpush1.msra.mxu0 0.0
        %501 = vmatprep.subr.mxu0 0.0
        %502 = vmatpush1.msra.mxu0 0.0
        %503 = vmatprep.subr.mxu0 0.0
        %504 = vmatpush1.msra.mxu0 0.0
        %505 = vmatprep.subr.mxu0 0.0
        %506 = vmatpush1.msra.mxu0 0.0
        %507 = vmatprep.subr.mxu0 0.0
        %508 = vmatpush1.msra.mxu0 0.0
        %509 = vmatprep.subr.mxu0 0.0
        %510 = vmatpush1.msra.mxu0 0.0
        %511 = vmatprep.subr.mxu0 0.0
        %512 = vmatpush1.msra.mxu0 0.0
        %513 = vmatprep.subr.mxu0 0.0
        %514 = vmatpush1.msra.mxu0 0.0
        %515 = vmatprep.subr.mxu0 0.0
        %516 = vmatpush1.msra.mxu0 0.0
        %517 = vmatprep.subr.mxu0 0.0
        %518 = vmatpush1.msra.mxu0 0.0
        %519 = vmatprep.subr.mxu0 0.0
        %520 = vmatpush1.msra.mxu0 0.0
        %521 = vmatprep.subr.mxu0 0.0
        %522 = vmatpush1.msra.mxu0 0.0
        %523 = vmatprep.subr.mxu0 0.0
        %524 = vmatpush1.msra.mxu0 0.0
        %525 = vmatprep.subr.mxu0 0.0
        %526 = vmatpush1.msra.mxu0 0.0
        %527 = vmatprep.subr.mxu0 0.0
        %528 = vmatpush1.msra.mxu0 0.0
        %529 = vmatprep.subr.mxu0 0.0
        %530 = vmatpush1.msra.mxu0 0.0
        %531 = vmatprep.mubr.f32.mxu0 0.0
        %532 = vmatmul.mubr.f32.gmra.mrb[0].mxu0 %v456
        %v533 = vpop.f32.mrb[0].mxu0
        %v534 = vadd.f32 %v437, %v533
        %v535 = vpop.f32.mrb[0].mxu0
        %536 = vmatprep.mubr.f32.mxu0 0.0
        %537 = vmatmul.mubr.f32.gmra.mrb[0].mxu0 %v459
        %v538 = vpop.f32.mrb[0].mxu0
        %v539 = vadd.f32 %v442, %v538
        %v540 = vpop.f32.mrb[0].mxu0
        %541 = vmatprep.mubr.f32.mxu0 0.0
        %542 = vmatmul.mubr.f32.gmra.mrb[0].mxu0 %v462
        %v543 = vpop.f32.mrb[0].mxu0
        %v544 = vadd.f32 %v447, %v543
        %v545 = vpop.f32.mrb[0].mxu0
        %546 = vmatprep.mubr.f32.mxu0 0.0
        %547 = vmatmul.mubr.f32.gmra.mrb[0].mxu0 %v465
        %v548 = vpop.f32.mrb[0].mxu0
        %v549 = vadd.f32 %v452, %v548
        %v550 = vpop.f32.mrb[0].mxu0
        %551 = vdwg.mxu0
        %552 = vst.msk [vmem:[%s317] sm:$0xff] %vm454, %v534
        %553 = vst.msk [vmem:[%s317 + $0x8] sm:$0xff] %vm454, %v539
        %554 = vst.msk [vmem:[%s317 + $0x10] sm:$0xff] %vm454, %v544
        %555 = vst.msk [vmem:[%s317 + $0x18] sm:$0xff] %vm454, %v549
        %s556 = sand.u32 %s158, 1
        %s557 = scalar_lea.sflag [#allocation4], %s556
        %s558 = sand.u32 %s158, 1
        %s559 = smul.addr %s558, 32
        %s560 = scalar_lea.vmem [#allocation11], %s559
        // Predicated region
        $region61: #{tpu_custom_call.1} parent=39 // pred_check
          %p561 = pneg %p168
        $region62: #{tpu_custom_call.1} parent=39 // pred_check_branch
          %563 = sbr.rel (%p561) target = $region64
        $region63: #{tpu_custom_call.1} parent=39 // pred_region
          %s565 = ssub.s32 512, 512
          %566 = vsyncadd %s557, %s565
          %s567 = smul.addr %s28, 4
          %s568 = sadd.s32 %s29, %s567
          %s569 = smul.addr %s568, 128
          %s570 = scalar_lea.hbm %s5, %s569
          %s571 = sshll.u32 %s560, 4
          %s572 = int_to_ptr.vmem [resolvable:$true] %s571
          %577 = dma.vmem_to_hbm [thread:$0]  %s572, 512, %s570, %s557, 128, 128, 8
        $region64: #{tpu_custom_call.1} parent=39 // pred_fallthru
          _
      $region40: #{tpu_custom_call.1} parent=5 // pred_fallthru
        _
      %p578 = scmp.le.s32.totalorder 2, %s19
      // Predicated region
      $region65: #{tpu_custom_call.1} parent=5 // pred_check
        %p579 = pneg %p578
      $region66: #{tpu_custom_call.1} parent=5 // pred_check_branch
        %581 = sbr.rel (%p579) target = $region68
      $region67: #{tpu_custom_call.1} parent=5 // pred_region
        %s582 = ssub.s32 %s19, 2
        // Predicated region
        $region69: #{tpu_custom_call.1} parent=67 // pred_check
          %p583 = pneg %p174
        $region70: #{tpu_custom_call.1} parent=67 // pred_check_branch
          %585 = sbr.rel (%p583) target = $region72
        $region71: #{tpu_custom_call.1} parent=67 // pred_region
          %s586 = sand.u32 %s159, 1
          %s587 = scalar_lea.sflag [#allocation4], %s586
          %s588 = sand.u32 %s159, 1
          %s589 = smul.addr %s588, 32
          %s590 = scalar_lea.vmem [#allocation11], %s589
          %591 = dma.done %s587, 512
        $region72: #{tpu_custom_call.1} parent=67 // pred_fallthru
          _
      $region68: #{tpu_custom_call.1} parent=5 // pred_fallthru
        _
    $region6: #{tpu_custom_call.1} parent=1 // loop_footer
      %s23 = sadd.s32 1, %s19
    $region7: #{tpu_custom_call.1} parent=1 // loop_footer_branch
      %18 = sbr.rel target = $region3
    $region8: #{tpu_custom_call.1} parent=1 // loop_exit
      _
    %592 = vsyncpa [#allocation3], 1
    %s593 = scalar_lea.sflag [#allocation3], 1
    %594 = vsyncpa %s593, 1
    %595 = vsyncpa [#allocation6], 1
    %596 = vsyncpa [#allocation9], 1
    %597 = vsyncpa [#allocation4], 1
    %s598 = scalar_lea.sflag [#allocation4], 1
    %599 = vsyncpa %s598, 1

</llo_original>
